<compile_context>
chip_gen: v7x
topology: tpu7x:2x2x1
jax: 0.10.0
libtpu: 0.0.40
codegen_flags: <defaults>
</compile_context>

<pallas_src>
import jax
import jax.numpy as jnp
from jax.experimental import pallas as pl
from jax.experimental.pallas import tpu as pltpu


def _round_up(x, m):
    return ((x + m - 1) // m) * m


def _fold_bn(gamma, beta, mean, var, eps=1e-5):
    scale = gamma / jnp.sqrt(var + eps)
    shift = beta - mean * scale
    return scale, shift


# --------------------------------------------------------------------------- #
# Pallas kernel: multi-hot embedding matmul + plain MLP (BN folded by wrapper)
# --------------------------------------------------------------------------- #
def _make_kernel(n_hidden, vocab_total, compute_dtype):
    """Refs: x_cat, x_cont, m_emb, w_cont, (w_l, b_l)*(n_hidden-1), w_out, b_out, out."""

    def kernel(x_cat_ref, x_cont_ref, m_emb_ref, w_cont_ref, *rest):
        out_ref = rest[-1]
        wb = rest[:-1]

        ids = x_cat_ref[...]                          # (bm, n_cat) int32, already offset
        bm, n_cat = ids.shape
        vocab_pad = m_emb_ref.shape[0]

        # Multi-hot over the stacked vocab (one 1 per categorical column) plus a
        # constant-1 column at index `vocab_total` that carries the folded first-layer
        # bias (that row of m_emb holds b_first).
        lane = jax.lax.broadcasted_iota(jnp.int32, (bm, vocab_pad), 1)
        hot = lane == vocab_total
        for c in range(n_cat):
            hot = jnp.logical_or(hot, lane == ids[:, c:c + 1])
        hot = hot.astype(compute_dtype)

        # Embedding lookup + first Linear (emb half) fused into one MXU dot.
        h = jnp.dot(hot, m_emb_ref[...], preferred_element_type=jnp.float32)
        # Continuous half (bn_cont folded into w_cont).
        h = h + jnp.dot(x_cont_ref[...].astype(compute_dtype), w_cont_ref[...],
                        preferred_element_type=jnp.float32)
        h = jnp.maximum(h, 0.0)                       # ReLU; Dropout(eval) = identity

        k = 0
        for _ in range(n_hidden - 1):
            w = wb[k][...]                            # (h_prev_pad, h_pad), compute dtype
            b = wb[k + 1][...]                        # (1, h_pad), f32
            h = jnp.dot(h.astype(compute_dtype), w,
                        preferred_element_type=jnp.float32) + b
            h = jnp.maximum(h, 0.0)
            k += 2

        w_out = wb[k][...]                            # (h_last_pad, out_sz)
        b_out = wb[k + 1][...]                        # (1, out_sz)
        out_ref[...] = jnp.dot(h.astype(compute_dtype), w_out,
                               preferred_element_type=jnp.float32) + b_out

    return kernel


# --------------------------------------------------------------------------- #
# Wrapper: BN folding, embedding-table folding, batch tiling, pallas_call
# --------------------------------------------------------------------------- #
def tabular_forward(x_cat, x_cont, params, block_b=1024, compute_dtype=jnp.bfloat16):
    """Eval-mode forward of TabularModel.  All heavy work (embedding lookup, every
    Linear/ReLU) runs inside one batch-gridded Pallas kernel; the wrapper only folds
    parameters (batch-independent; cache it in real use) and pads the batch."""
    emb_tables = params["emb_tables"]
    hidden = params["hidden"]
    n_emb = sum(int(t.shape[1]) for t in emb_tables)
    n_cont = int(x_cont.shape[1])
    out_sz = int(params["w_out"].shape[1])
    n_hidden = len(hidden)

    h_dims = [int(lyr["w"].shape[1]) for lyr in hidden]
    h_pads = [_round_up(h, 128) for h in h_dims]          # lane-aligned hidden widths

    # ---- first layer: fold bn_cont, fold each embedding table through W1 --------- #
    w1, b1 = hidden[0]["w"], hidden[0]["b"]
    cs, csh = _fold_bn(*params["bn_cont"])
    w1e, w1c = w1[:n_emb, :], w1[n_emb:, :]
    w_cont = cs[:, None] * w1c                             # (n_cont, h0)
    b_first = b1 + csh @ w1c                               # (h0,)

    vocab_sizes = [int(t.shape[0]) for t in emb_tables]
    vocab_total = sum(vocab_sizes)
    vocab_pad = _round_up(vocab_total + 1, 16)             # +1 row carries b_first
    h0, h0p = h_dims[0], h_pads[0]

    m_emb = jnp.zeros((vocab_pad, h0p), jnp.float32)
    foff = voff = 0
    for tbl in emb_tables:
        ni, nf = int(tbl.shape[0]), int(tbl.shape[1])
        m_emb = m_emb.at[voff:voff + ni, :h0].set(tbl @ w1e[foff:foff + nf, :])
        voff += ni
        foff += nf
    m_emb = m_emb.at[vocab_total, :h0].set(b_first)        # bias row (const-1 column)
    w_cont_p = jnp.zeros((n_cont, h0p), jnp.float32).at[:, :h0].set(w_cont)

    # ---- fold each layer's post-ReLU BN into the NEXT layer's weights ------------ #
    s_prev, sh_prev = _fold_bn(*hidden[0]["bn"])
    hidden_wb = []
    for l in range(1, n_hidden):
        w, b = hidden[l]["w"], hidden[l]["b"]
        wf = s_prev[:, None] * w
        bf = sh_prev @ w + b
        wp = jnp.zeros((h_pads[l - 1], h_pads[l]), jnp.float32)
        wp = wp.at[:h_dims[l - 1], :h_dims[l]].set(wf)
        bp = jnp.zeros((1, h_pads[l]), jnp.float32).at[0, :h_dims[l]].set(bf)
        hidden_wb.append((wp, bp))
        s_prev, sh_prev = _fold_bn(*hidden[l]["bn"])

    w_out_f = s_prev[:, None] * params["w_out"]
    b_out_f = sh_prev @ params["w_out"] + params["b_out"]
    w_out_p = jnp.zeros((h_pads[-1], out_sz), jnp.float32).at[:h_dims[-1], :].set(w_out_f)
    b_out_p = b_out_f.reshape(1, out_sz)

    cd = compute_dtype
    const_args = [m_emb.astype(cd), w_cont_p.astype(cd)]
    for wp, bp in hidden_wb:
        const_args += [wp.astype(cd), bp]                  # biases stay f32
    const_args += [w_out_p.astype(cd), b_out_p]

    # ---- batch operands ----------------------------------------------------------- #
    voffs, acc = [], 0
    for ni in vocab_sizes:
        voffs.append(acc)
        acc += ni
    ids = x_cat.astype(jnp.int32) + jnp.asarray(voffs, jnp.int32)[None, :]
    xc = x_cont.astype(jnp.float32)
    B, n_cat = int(ids.shape[0]), int(ids.shape[1])

    # ---- batch tiling + VMEM budgeting -------------------------------------------- #
    dt_b = jnp.dtype(cd).itemsize
    pack = 8 * (4 // dt_b)                                 # 16 for bf16, 8 for f32
    bm = _round_up(min(block_b, _round_up(B, pack)), pack)
    if B >= 2 * pack:                                      # >=2 grid steps when batch allows
        bm = min(bm, _round_up((B + 1) // 2, pack))
    # TODO(synk): on v7x try dimension_semantics=(pltpu.CORE_PARALLEL,) for the batch axis.

    try:
        cap = int(pltpu.get_tpu_info().vmem_capacity_bytes)
    except Exception:
        cap = 64 << 20                                     # conservative (v7x per-TC)

    w_bytes = sum(int(a.size) * a.dtype.itemsize for a in const_args)
    h_max_p = max(h_pads)

    def _vmem_est(bm_):
        io = 2 * bm_ * (n_cat * 4 + n_cont * 4 + out_sz * 4)            # pipelined blocks
        work = bm_ * (vocab_pad * dt_b + 2 * h_max_p * 4 + 2 * h_max_p * dt_b)
        return 2 * w_bytes + io + work                                  # worst case: 2x weights

    budget = int(0.6 * cap)
    while bm > pack and _vmem_est(bm) > budget:
        bm = max(pack, _round_up(bm // 2, pack))
    vmem_limit = int(min(int(0.85 * cap), max(2 * _vmem_est(bm), 32 << 20)))

    B_pad = _round_up(B, bm)
    if B_pad != B:
        ids = jnp.pad(ids, ((0, B_pad - B), (0, 0)))       # pad rows -> garbage, sliced off
        xc = jnp.pad(xc, ((0, B_pad - B), (0, 0)))

    kernel = _make_kernel(n_hidden, vocab_total, cd)

    def _run(single_buffer_consts):
        cw = dict(pipeline_mode=pl.Buffered(1)) if single_buffer_consts else {}
        in_specs = [
            pl.BlockSpec((bm, n_cat), lambda i: (i, 0)),
            pl.BlockSpec((bm, n_cont), lambda i: (i, 0)),
        ] + [pl.BlockSpec(a.shape, lambda i: (0, 0), **cw) for a in const_args]
        out_specs = pl.BlockSpec((bm, out_sz), lambda i: (i, 0))
        return pl.pallas_call(
            kernel,
            out_shape=jax.ShapeDtypeStruct((B_pad, out_sz), jnp.float32),
            grid=(B_pad // bm,),
            in_specs=in_specs,
            out_specs=out_specs,
            compiler_params=pltpu.CompilerParams(
                dimension_semantics=("parallel",),          # megacore batch split
                vmem_limit_bytes=vmem_limit,
            ),
        )(ids, xc, *const_args)

    try:
        out = jax.block_until_ready(_run(True))             # single-buffered weights
    except Exception:
        out = jax.block_until_ready(_run(False))            # fallback: default buffering

    # TODO(synk): for large vocabularies the multi-hot matmul should be replaced by a
    #             PrefetchScalarGridSpec / pl.Element row-gather of the embedding rows.
    return out[:B] if B_pad != B else out


# --------------------------------------------------------------------------- #
# Deterministic parameter construction + plain-JAX reference
# --------------------------------------------------------------------------- #
def make_params(key, emb_szs, n_cont, out_sz, layers):
    keys = iter(jax.random.split(key, 64))
    params = {}
    params["emb_tables"] = [
        jax.random.normal(next(keys), (ni, nf), jnp.float32) * 0.1 for ni, nf in emb_szs
    ]
    params["bn_cont"] = (
        jnp.ones((n_cont,), jnp.float32),
        jnp.zeros((n_cont,), jnp.float32),
        jax.random.normal(next(keys), (n_cont,), jnp.float32) * 0.1,
        jnp.abs(jax.random.normal(next(keys), (n_cont,), jnp.float32)) + 0.5,
    )
    n_emb = sum(nf for _, nf in emb_szs)
    n_in = n_emb + n_cont
    hidden = []
    for h in layers:
        w = jax.random.normal(next(keys), (n_in, h), jnp.float32) * (1.0 / jnp.sqrt(n_in))
        b = jax.random.normal(next(keys), (h,), jnp.float32) * 0.01
        bn = (
            jnp.ones((h,), jnp.float32) + 0.1 * jax.random.normal(next(keys), (h,), jnp.float32),
            0.1 * jax.random.normal(next(keys), (h,), jnp.float32),
            0.1 * jax.random.normal(next(keys), (h,), jnp.float32),
            jnp.abs(jax.random.normal(next(keys), (h,), jnp.float32)) + 0.5,
        )
        hidden.append({"w": w, "b": b, "bn": bn})
        n_in = h
    params["hidden"] = hidden
    params["w_out"] = jax.random.normal(next(keys), (layers[-1], out_sz), jnp.float32) * (
        1.0 / jnp.sqrt(layers[-1])
    )
    params["b_out"] = jax.random.normal(next(keys), (out_sz,), jnp.float32) * 0.01
    return params


def reference_forward(x_cat, x_cont, params):
    """Plain-JAX eval-mode reference (mirrors the PyTorch module)."""
    eps = 1e-5
    embs = [tbl[x_cat[:, i]] for i, tbl in enumerate(params["emb_tables"])]
    x = jnp.concatenate(embs, axis=1)
    g, b, m, v = params["bn_cont"]
    xc = (x_cont - m) / jnp.sqrt(v + eps) * g + b
    x = jnp.concatenate([x, xc], axis=1)
    for lyr in params["hidden"]:
        x = jnp.maximum(x @ lyr["w"] + lyr["b"], 0.0)
        g, b, m, v = lyr["bn"]
        x = (x - m) / jnp.sqrt(v + eps) * g + b
    return x @ params["w_out"] + params["b_out"]


if __name__ == "__main__":
    emb_szs = [(10, 5), (7, 3)]     # -> n_emb = 8
    n_cont = 4
    out_sz = 2
    layers = [32, 16]
    B = 8

    key = jax.random.PRNGKey(0)
    k_params, k_cat0, k_cat1, k_cont = jax.random.split(key, 4)

    params = make_params(k_params, emb_szs, n_cont, out_sz, layers)
    x_cat = jnp.stack(
        [
            jax.random.randint(k_cat0, (B,), 0, emb_szs[0][0]),
            jax.random.randint(k_cat1, (B,), 0, emb_szs[1][0]),
        ],
        axis=1,
    ).astype(jnp.int32)                                        # (B, 2)
    x_cont = jax.random.normal(k_cont, (B, n_cont), jnp.float32)  # (B, 4)

    ref = reference_forward(x_cat, x_cont, params)

    # Exact-structure check: f32 compute path, tight tolerance.
    out_f32 = jax.block_until_ready(
        tabular_forward(x_cat, x_cont, params, compute_dtype=jnp.float32))
    assert out_f32.shape == (B, out_sz)
    assert jnp.allclose(out_f32, ref, atol=1e-4, rtol=1e-4), "f32 kernel mismatch vs reference"

    # Default perf path: bf16 matmul operands, f32 accumulation (looser tolerance).
    out_bf16 = jax.block_until_ready(tabular_forward(x_cat, x_cont, params))
    assert out_bf16.shape == (B, out_sz)
    assert jnp.allclose(out_bf16, ref, atol=1e-1, rtol=1e-1), "bf16 kernel mismatch vs reference"

    print("KERNEL_OK")
</pallas_src>

<mosaic_0001>
module attributes {stable_mosaic.version = 11 : i64} {
  func.func @kernel(%arg0: i32, %arg1: memref<8x2xi32, #tpu.memory_space<vmem>>, %arg2: memref<8x4xf32, #tpu.memory_space<vmem>>, %arg3: memref<32x128xf32, #tpu.memory_space<vmem>>, %arg4: memref<4x128xf32, #tpu.memory_space<vmem>>, %arg5: memref<128x128xf32, #tpu.memory_space<vmem>>, %arg6: memref<1x128xf32, #tpu.memory_space<vmem>>, %arg7: memref<128x2xf32, #tpu.memory_space<vmem>>, %arg8: memref<1x2xf32, #tpu.memory_space<vmem>>, %arg9: memref<8x2xf32, #tpu.memory_space<vmem>>) attributes {dimension_semantics = [#tpu.dimension_semantics<parallel>], iteration_bounds = array<i64: 1>, scalar_prefetch = 0 : i64, scratch_operands = 0 : i64, tpu.core_type = #tpu.core_type<tc>, window_params = [{transform_indices = @transform_0, window_bounds = array<i64: 8, 2>}, {transform_indices = @transform_1, window_bounds = array<i64: 8, 4>}, {pipeline_mode = #tpu.pipeline_mode<synchronous>, transform_indices = @transform_2, window_bounds = array<i64: 32, 128>}, {pipeline_mode = #tpu.pipeline_mode<synchronous>, transform_indices = @transform_3, window_bounds = array<i64: 4, 128>}, {pipeline_mode = #tpu.pipeline_mode<synchronous>, transform_indices = @transform_4, window_bounds = array<i64: 128, 128>}, {pipeline_mode = #tpu.pipeline_mode<synchronous>, transform_indices = @transform_5, window_bounds = array<i64: 1, 128>}, {pipeline_mode = #tpu.pipeline_mode<synchronous>, transform_indices = @transform_6, window_bounds = array<i64: 128, 2>}, {pipeline_mode = #tpu.pipeline_mode<synchronous>, transform_indices = @transform_7, window_bounds = array<i64: 1, 2>}, {transform_indices = @transform_8, window_bounds = array<i64: 8, 2>}]} {
    %c0 = arith.constant 0 : index
    %c0_0 = arith.constant 0 : index
    %0 = vector.load %arg1[%c0, %c0_0] : memref<8x2xi32, #tpu.memory_space<vmem>>, vector<8x2xi32>
    %1 = tpu.iota {dimensions = array<i32: 1>} : vector<8x32xi32>
    %c17_i32 = arith.constant 17 : i32
    %2 = vector.broadcast %c17_i32 : i32 to vector<8x32xi32>
    %3 = arith.cmpi eq, %1, %2 : vector<8x32xi32>
    %4 = vector.extract_strided_slice %0 {offsets = [0, 0], sizes = [8, 1], strides = [1, 1]} : vector<8x2xi32> to vector<8x1xi32>
    %5 = vector.broadcast %4 : vector<8x1xi32> to vector<8x32xi32>
    %6 = arith.cmpi eq, %1, %5 : vector<8x32xi32>
    %7 = arith.ori %3, %6 : vector<8x32xi1>
    %8 = vector.extract_strided_slice %0 {offsets = [0, 1], sizes = [8, 1], strides = [1, 1]} : vector<8x2xi32> to vector<8x1xi32>
    %9 = vector.broadcast %8 : vector<8x1xi32> to vector<8x32xi32>
    %10 = arith.cmpi eq, %1, %9 : vector<8x32xi32>
    %11 = arith.ori %7, %10 : vector<8x32xi1>
    %12 = arith.extui %11 : vector<8x32xi1> to vector<8x32xi32>
    %13 = arith.sitofp %12 : vector<8x32xi32> to vector<8x32xf32>
    %c0_1 = arith.constant 0 : index
    %c0_2 = arith.constant 0 : index
    %14 = vector.load %arg3[%c0_1, %c0_2] : memref<32x128xf32, #tpu.memory_space<vmem>>, vector<32x128xf32>
    %cst = arith.constant dense<0.000000e+00> : vector<8x128xf32>
    %15 = tpu.matmul %13, %14, %cst {dimension_numbers = #tpu.dot_dimension_numbers<[1], [0], [0], [1], [0, 0, 1, 1], [], []>} : vector<8x32xf32>, vector<32x128xf32>, vector<8x128xf32> -> vector<8x128xf32>
    %c0_3 = arith.constant 0 : index
    %c0_4 = arith.constant 0 : index
    %16 = vector.load %arg2[%c0_3, %c0_4] : memref<8x4xf32, #tpu.memory_space<vmem>>, vector<8x4xf32>
    %c0_5 = arith.constant 0 : index
    %c0_6 = arith.constant 0 : index
    %17 = vector.load %arg4[%c0_5, %c0_6] : memref<4x128xf32, #tpu.memory_space<vmem>>, vector<4x128xf32>
    %cst_7 = arith.constant dense<0.000000e+00> : vector<8x128xf32>
    %18 = tpu.matmul %16, %17, %cst_7 {dimension_numbers = #tpu.dot_dimension_numbers<[1], [0], [0], [1], [0, 0, 1, 1], [], []>} : vector<8x4xf32>, vector<4x128xf32>, vector<8x128xf32> -> vector<8x128xf32>
    %19 = arith.addf %15, %18 : vector<8x128xf32>
    %cst_8 = arith.constant 0.000000e+00 : f32
    %20 = vector.broadcast %cst_8 : f32 to vector<8x128xf32>
    %21 = arith.maximumf %19, %20 : vector<8x128xf32>
    %c0_9 = arith.constant 0 : index
    %c0_10 = arith.constant 0 : index
    %22 = vector.load %arg5[%c0_9, %c0_10] : memref<128x128xf32, #tpu.memory_space<vmem>>, vector<128x128xf32>
    %c0_11 = arith.constant 0 : index
    %c0_12 = arith.constant 0 : index
    %23 = vector.load %arg6[%c0_11, %c0_12] : memref<1x128xf32, #tpu.memory_space<vmem>>, vector<1x128xf32>
    %cst_13 = arith.constant dense<0.000000e+00> : vector<8x128xf32>
    %24 = tpu.matmul %21, %22, %cst_13 {dimension_numbers = #tpu.dot_dimension_numbers<[1], [0], [0], [1], [0, 0, 1, 1], [], []>} : vector<8x128xf32>, vector<128x128xf32>, vector<8x128xf32> -> vector<8x128xf32>
    %25 = vector.broadcast %23 : vector<1x128xf32> to vector<8x128xf32>
    %26 = arith.addf %24, %25 : vector<8x128xf32>
    %cst_14 = arith.constant 0.000000e+00 : f32
    %27 = vector.broadcast %cst_14 : f32 to vector<8x128xf32>
    %28 = arith.maximumf %26, %27 : vector<8x128xf32>
    %c0_15 = arith.constant 0 : index
    %c0_16 = arith.constant 0 : index
    %29 = vector.load %arg7[%c0_15, %c0_16] : memref<128x2xf32, #tpu.memory_space<vmem>>, vector<128x2xf32>
    %c0_17 = arith.constant 0 : index
    %c0_18 = arith.constant 0 : index
    %30 = vector.load %arg8[%c0_17, %c0_18] : memref<1x2xf32, #tpu.memory_space<vmem>>, vector<1x2xf32>
    %cst_19 = arith.constant dense<0.000000e+00> : vector<8x2xf32>
    %31 = tpu.matmul %28, %29, %cst_19 {dimension_numbers = #tpu.dot_dimension_numbers<[1], [0], [0], [1], [0, 0, 1, 1], [], []>} : vector<8x128xf32>, vector<128x2xf32>, vector<8x2xf32> -> vector<8x2xf32>
    %32 = vector.broadcast %30 : vector<1x2xf32> to vector<8x2xf32>
    %33 = arith.addf %31, %32 : vector<8x2xf32>
    %c0_20 = arith.constant 0 : index
    %c0_21 = arith.constant 0 : index
    %34 = vector.load %arg9[%c0_20, %c0_21] : memref<8x2xf32, #tpu.memory_space<vmem>>, vector<8x2xf32>
    tpu.vector_store %arg9[%c0_20, %c0_21], %33 {strides = array<i32>} : memref<8x2xf32, #tpu.memory_space<vmem>>, vector<8x2xf32>,
    return
  }
  func.func @transform_0(%arg0: i32) -> (i32, i32) {
    %c0_i32 = arith.constant 0 : i32
    %c0_i32_0 = arith.constant 0 : i32
    return %arg0, %c0_i32 : i32, i32
  }
  func.func @transform_1(%arg0: i32) -> (i32, i32) {
    %c0_i32 = arith.constant 0 : i32
    %c0_i32_0 = arith.constant 0 : i32
    return %arg0, %c0_i32 : i32, i32
  }
  func.func @transform_2(%arg0: i32) -> (i32, i32) {
    %c0_i32 = arith.constant 0 : i32
    %c0_i32_0 = arith.constant 0 : i32
    %c0_i32_1 = arith.constant 0 : i32
    return %c0_i32, %c0_i32_0 : i32, i32
  }
  func.func @transform_3(%arg0: i32) -> (i32, i32) {
    %c0_i32 = arith.constant 0 : i32
    %c0_i32_0 = arith.constant 0 : i32
    %c0_i32_1 = arith.constant 0 : i32
    return %c0_i32, %c0_i32_0 : i32, i32
  }
  func.func @transform_4(%arg0: i32) -> (i32, i32) {
    %c0_i32 = arith.constant 0 : i32
    %c0_i32_0 = arith.constant 0 : i32
    %c0_i32_1 = arith.constant 0 : i32
    return %c0_i32, %c0_i32_0 : i32, i32
  }
  func.func @transform_5(%arg0: i32) -> (i32, i32) {
    %c0_i32 = arith.constant 0 : i32
    %c0_i32_0 = arith.constant 0 : i32
    %c0_i32_1 = arith.constant 0 : i32
    return %c0_i32, %c0_i32_0 : i32, i32
  }
  func.func @transform_6(%arg0: i32) -> (i32, i32) {
    %c0_i32 = arith.constant 0 : i32
    %c0_i32_0 = arith.constant 0 : i32
    %c0_i32_1 = arith.constant 0 : i32
    return %c0_i32, %c0_i32_0 : i32, i32
  }
  func.func @transform_7(%arg0: i32) -> (i32, i32) {
    %c0_i32 = arith.constant 0 : i32
    %c0_i32_0 = arith.constant 0 : i32
    %c0_i32_1 = arith.constant 0 : i32
    return %c0_i32, %c0_i32_0 : i32, i32
  }
  func.func @transform_8(%arg0: i32) -> (i32, i32) {
    %c0_i32 = arith.constant 0 : i32
    %c0_i32_0 = arith.constant 0 : i32
    return %arg0, %c0_i32 : i32, i32
  }
}

module attributes {stable_mosaic.version = 11 : i64} {
  func.func @kernel(%arg0: i32, %arg1: memref<8x2xi32, #tpu.memory_space<vmem>>, %arg2: memref<8x4xf32, #tpu.memory_space<vmem>>, %arg3: memref<32x128xf32, #tpu.memory_space<vmem>>, %arg4: memref<4x128xf32, #tpu.memory_space<vmem>>, %arg5: memref<128x128xf32, #tpu.memory_space<vmem>>, %arg6: memref<1x128xf32, #tpu.memory_space<vmem>>, %arg7: memref<128x2xf32, #tpu.memory_space<vmem>>, %arg8: memref<1x2xf32, #tpu.memory_space<vmem>>, %arg9: memref<8x2xf32, #tpu.memory_space<vmem>>) attributes {dimension_semantics = [#tpu.dimension_semantics<parallel>], iteration_bounds = array<i64: 1>, scalar_prefetch = 0 : i64, scratch_operands = 0 : i64, tpu.core_type = #tpu.core_type<tc>, window_params = [{transform_indices = @transform_0, window_bounds = array<i64: 8, 2>}, {transform_indices = @transform_1, window_bounds = array<i64: 8, 4>}, {pipeline_mode = #tpu.pipeline_mode<synchronous>, transform_indices = @transform_2, window_bounds = array<i64: 32, 128>}, {pipeline_mode = #tpu.pipeline_mode<synchronous>, transform_indices = @transform_3, window_bounds = array<i64: 4, 128>}, {pipeline_mode = #tpu.pipeline_mode<synchronous>, transform_indices = @transform_4, window_bounds = array<i64: 128, 128>}, {pipeline_mode = #tpu.pipeline_mode<synchronous>, transform_indices = @transform_5, window_bounds = array<i64: 1, 128>}, {pipeline_mode = #tpu.pipeline_mode<synchronous>, transform_indices = @transform_6, window_bounds = array<i64: 128, 2>}, {pipeline_mode = #tpu.pipeline_mode<synchronous>, transform_indices = @transform_7, window_bounds = array<i64: 1, 2>}, {transform_indices = @transform_8, window_bounds = array<i64: 8, 2>}]} {
    %c0 = arith.constant 0 : index
    %c0_0 = arith.constant 0 : index
    %0 = vector.load %arg1[%c0, %c0_0] : memref<8x2xi32, #tpu.memory_space<vmem>>, vector<8x2xi32>
    %1 = tpu.iota {dimensions = array<i32: 1>} : vector<8x32xi32>
    %c17_i32 = arith.constant 17 : i32
    %2 = vector.broadcast %c17_i32 : i32 to vector<8x32xi32>
    %3 = arith.cmpi eq, %1, %2 : vector<8x32xi32>
    %4 = vector.extract_strided_slice %0 {offsets = [0, 0], sizes = [8, 1], strides = [1, 1]} : vector<8x2xi32> to vector<8x1xi32>
    %5 = vector.broadcast %4 : vector<8x1xi32> to vector<8x32xi32>
    %6 = arith.cmpi eq, %1, %5 : vector<8x32xi32>
    %7 = arith.ori %3, %6 : vector<8x32xi1>
    %8 = vector.extract_strided_slice %0 {offsets = [0, 1], sizes = [8, 1], strides = [1, 1]} : vector<8x2xi32> to vector<8x1xi32>
    %9 = vector.broadcast %8 : vector<8x1xi32> to vector<8x32xi32>
    %10 = arith.cmpi eq, %1, %9 : vector<8x32xi32>
    %11 = arith.ori %7, %10 : vector<8x32xi1>
    %12 = arith.extui %11 : vector<8x32xi1> to vector<8x32xi32>
    %13 = arith.sitofp %12 : vector<8x32xi32> to vector<8x32xf32>
    %c0_1 = arith.constant 0 : index
    %c0_2 = arith.constant 0 : index
    %14 = vector.load %arg3[%c0_1, %c0_2] : memref<32x128xf32, #tpu.memory_space<vmem>>, vector<32x128xf32>
    %cst = arith.constant dense<0.000000e+00> : vector<8x128xf32>
    %15 = tpu.matmul %13, %14, %cst {dimension_numbers = #tpu.dot_dimension_numbers<[1], [0], [0], [1], [0, 0, 1, 1], [], []>} : vector<8x32xf32>, vector<32x128xf32>, vector<8x128xf32> -> vector<8x128xf32>
    %c0_3 = arith.constant 0 : index
    %c0_4 = arith.constant 0 : index
    %16 = vector.load %arg2[%c0_3, %c0_4] : memref<8x4xf32, #tpu.memory_space<vmem>>, vector<8x4xf32>
    %c0_5 = arith.constant 0 : index
    %c0_6 = arith.constant 0 : index
    %17 = vector.load %arg4[%c0_5, %c0_6] : memref<4x128xf32, #tpu.memory_space<vmem>>, vector<4x128xf32>
    %cst_7 = arith.constant dense<0.000000e+00> : vector<8x128xf32>
    %18 = tpu.matmul %16, %17, %cst_7 {dimension_numbers = #tpu.dot_dimension_numbers<[1], [0], [0], [1], [0, 0, 1, 1], [], []>} : vector<8x4xf32>, vector<4x128xf32>, vector<8x128xf32> -> vector<8x128xf32>
    %19 = arith.addf %15, %18 : vector<8x128xf32>
    %cst_8 = arith.constant 0.000000e+00 : f32
    %20 = vector.broadcast %cst_8 : f32 to vector<8x128xf32>
    %21 = arith.maximumf %19, %20 : vector<8x128xf32>
    %c0_9 = arith.constant 0 : index
    %c0_10 = arith.constant 0 : index
    %22 = vector.load %arg5[%c0_9, %c0_10] : memref<128x128xf32, #tpu.memory_space<vmem>>, vector<128x128xf32>
    %c0_11 = arith.constant 0 : index
    %c0_12 = arith.constant 0 : index
    %23 = vector.load %arg6[%c0_11, %c0_12] : memref<1x128xf32, #tpu.memory_space<vmem>>, vector<1x128xf32>
    %cst_13 = arith.constant dense<0.000000e+00> : vector<8x128xf32>
    %24 = tpu.matmul %21, %22, %cst_13 {dimension_numbers = #tpu.dot_dimension_numbers<[1], [0], [0], [1], [0, 0, 1, 1], [], []>} : vector<8x128xf32>, vector<128x128xf32>, vector<8x128xf32> -> vector<8x128xf32>
    %25 = vector.broadcast %23 : vector<1x128xf32> to vector<8x128xf32>
    %26 = arith.addf %24, %25 : vector<8x128xf32>
    %cst_14 = arith.constant 0.000000e+00 : f32
    %27 = vector.broadcast %cst_14 : f32 to vector<8x128xf32>
    %28 = arith.maximumf %26, %27 : vector<8x128xf32>
    %c0_15 = arith.constant 0 : index
    %c0_16 = arith.constant 0 : index
    %29 = vector.load %arg7[%c0_15, %c0_16] : memref<128x2xf32, #tpu.memory_space<vmem>>, vector<128x2xf32>
    %c0_17 = arith.constant 0 : index
    %c0_18 = arith.constant 0 : index
    %30 = vector.load %arg8[%c0_17, %c0_18] : memref<1x2xf32, #tpu.memory_space<vmem>>, vector<1x2xf32>
    %cst_19 = arith.constant dense<0.000000e+00> : vector<8x2xf32>
    %31 = tpu.matmul %28, %29, %cst_19 {dimension_numbers = #tpu.dot_dimension_numbers<[1], [0], [0], [1], [0, 0, 1, 1], [], []>} : vector<8x128xf32>, vector<128x2xf32>, vector<8x2xf32> -> vector<8x2xf32>
    %32 = vector.broadcast %30 : vector<1x2xf32> to vector<8x2xf32>
    %33 = arith.addf %31, %32 : vector<8x2xf32>
    %c0_20 = arith.constant 0 : index
    %c0_21 = arith.constant 0 : index
    %34 = vector.load %arg9[%c0_20, %c0_21] : memref<8x2xf32, #tpu.memory_space<vmem>>, vector<8x2xf32>
    tpu.vector_store %arg9[%c0_20, %c0_21], %33 {strides = array<i32>} : memref<8x2xf32, #tpu.memory_space<vmem>>, vector<8x2xf32>,
    return
  }
  func.func @transform_0(%arg0: i32) -> (i32, i32) {
    %c0_i32 = arith.constant 0 : i32
    %c0_i32_0 = arith.constant 0 : i32
    return %arg0, %c0_i32 : i32, i32
  }
  func.func @transform_1(%arg0: i32) -> (i32, i32) {
    %c0_i32 = arith.constant 0 : i32
    %c0_i32_0 = arith.constant 0 : i32
    return %arg0, %c0_i32 : i32, i32
  }
  func.func @transform_2(%arg0: i32) -> (i32, i32) {
    %c0_i32 = arith.constant 0 : i32
    %c0_i32_0 = arith.constant 0 : i32
    %c0_i32_1 = arith.constant 0 : i32
    return %c0_i32, %c0_i32_0 : i32, i32
  }
  func.func @transform_3(%arg0: i32) -> (i32, i32) {
    %c0_i32 = arith.constant 0 : i32
    %c0_i32_0 = arith.constant 0 : i32
    %c0_i32_1 = arith.constant 0 : i32
    return %c0_i32, %c0_i32_0 : i32, i32
  }
  func.func @transform_4(%arg0: i32) -> (i32, i32) {
    %c0_i32 = arith.constant 0 : i32
    %c0_i32_0 = arith.constant 0 : i32
    %c0_i32_1 = arith.constant 0 : i32
    return %c0_i32, %c0_i32_0 : i32, i32
  }
  func.func @transform_5(%arg0: i32) -> (i32, i32) {
    %c0_i32 = arith.constant 0 : i32
    %c0_i32_0 = arith.constant 0 : i32
    %c0_i32_1 = arith.constant 0 : i32
    return %c0_i32, %c0_i32_0 : i32, i32
  }
  func.func @transform_6(%arg0: i32) -> (i32, i32) {
    %c0_i32 = arith.constant 0 : i32
    %c0_i32_0 = arith.constant 0 : i32
    %c0_i32_1 = arith.constant 0 : i32
    return %c0_i32, %c0_i32_0 : i32, i32
  }
  func.func @transform_7(%arg0: i32) -> (i32, i32) {
    %c0_i32 = arith.constant 0 : i32
    %c0_i32_0 = arith.constant 0 : i32
    %c0_i32_1 = arith.constant 0 : i32
    return %c0_i32, %c0_i32_0 : i32, i32
  }
  func.func @transform_8(%arg0: i32) -> (i32, i32) {
    %c0_i32 = arith.constant 0 : i32
    %c0_i32_0 = arith.constant 0 : i32
    return %arg0, %c0_i32 : i32, i32
  }
}

</mosaic_0001>

<llo_original>
// kernel: tpu_custom_call.1
$region0: #{tpu_custom_call.1}
  #allocation0 [shape = 'u32[]', space=smem, size = 0x4, offset = 0x4, fixed_abs, tag = 'smem constant byte address 0x4 - core index']
  #allocation1 [shape = 'u32[144,128]{1,0:T(1,128)}', space=vmem, size = 0x12000, scoped, tag = 'internal scratch']
  %s0 = inlined_call_operand.vmem [shape: s32[8,2], index: 0, kind: input, shape index: {}]
  %s1 = inlined_call_operand.vmem [shape: f32[8,4], index: 1, kind: input, shape index: {}]
  %s2 = inlined_call_operand.vmem [shape: f32[32,128], index: 2, kind: input, shape index: {}]
  %s3 = inlined_call_operand.vmem [shape: f32[4,128], index: 3, kind: input, shape index: {}]
  %s4 = inlined_call_operand.vmem [shape: f32[128,128], index: 4, kind: input, shape index: {}]
  %s5 = inlined_call_operand.vmem [shape: f32[1,128], index: 5, kind: input, shape index: {}]
  %s6 = inlined_call_operand.vmem [shape: f32[128,2], index: 6, kind: input, shape index: {}]
  %s7 = inlined_call_operand.vmem [shape: f32[1,2], index: 7, kind: input, shape index: {}]
  %s8 = inlined_call_operand.vmem [shape: f32[8,2], index: 8, kind: output, shape index: {}]
  %s9 = sld [smem:[#allocation0]]
  $region42: #{tpu_custom_call.1} parent=0
    _
  %s11 = ssub.s32 1, %s9
  %s12 = scalar_select 0, %s11, %s9
  // Predicated region
  $region2: #{tpu_custom_call.1} parent=0 // pred_check
    _
  $region3: #{tpu_custom_call.1} parent=0 // pred_check_branch
    %14 = sbr.rel (0) target = $region5
  $region4: #{tpu_custom_call.1} parent=0 // pred_region
    _
  $region5: #{tpu_custom_call.1} parent=0 // pred_fallthru
    _
  // Predicated region
  $region6: #{tpu_custom_call.1} parent=0 // pred_check
    _
  $region7: #{tpu_custom_call.1} parent=0 // pred_check_branch
    %16 = sbr.rel (0) target = $region9
  $region8: #{tpu_custom_call.1} parent=0 // pred_region
    _
  $region9: #{tpu_custom_call.1} parent=0 // pred_fallthru
    _
  // Predicated region
  $region10: #{tpu_custom_call.1} parent=0 // pred_check
    _
  $region11: #{tpu_custom_call.1} parent=0 // pred_check_branch
    %18 = sbr.rel (0) target = $region13
  $region12: #{tpu_custom_call.1} parent=0 // pred_region
    _
  $region13: #{tpu_custom_call.1} parent=0 // pred_fallthru
    _
  // Predicated region
  $region14: #{tpu_custom_call.1} parent=0 // pred_check
    _
  $region15: #{tpu_custom_call.1} parent=0 // pred_check_branch
    %20 = sbr.rel (0) target = $region17
  $region16: #{tpu_custom_call.1} parent=0 // pred_region
    _
  $region17: #{tpu_custom_call.1} parent=0 // pred_fallthru
    _
  // Predicated region
  $region18: #{tpu_custom_call.1} parent=0 // pred_check
    _
  $region19: #{tpu_custom_call.1} parent=0 // pred_check_branch
    %22 = sbr.rel (0) target = $region21
  $region20: #{tpu_custom_call.1} parent=0 // pred_region
    _
  $region21: #{tpu_custom_call.1} parent=0 // pred_fallthru
    _
  // Predicated region
  $region22: #{tpu_custom_call.1} parent=0 // pred_check
    _
  $region23: #{tpu_custom_call.1} parent=0 // pred_check_branch
    %24 = sbr.rel (0) target = $region25
  $region24: #{tpu_custom_call.1} parent=0 // pred_region
    _
  $region25: #{tpu_custom_call.1} parent=0 // pred_fallthru
    _
  // Predicated region
  $region26: #{tpu_custom_call.1} parent=0 // pred_check
    _
  $region27: #{tpu_custom_call.1} parent=0 // pred_check_branch
    %26 = sbr.rel (0) target = $region29
  $region28: #{tpu_custom_call.1} parent=0 // pred_region
    _
  $region29: #{tpu_custom_call.1} parent=0 // pred_fallthru
    _
  // Predicated region
  $region30: #{tpu_custom_call.1} parent=0 // pred_check
    _
  $region31: #{tpu_custom_call.1} parent=0 // pred_check_branch
    %28 = sbr.rel (0) target = $region33
  $region32: #{tpu_custom_call.1} parent=0 // pred_region
    _
  $region33: #{tpu_custom_call.1} parent=0 // pred_fallthru
    _
  %v29 = vld [vmem:[%s0] sm:$0xff]
  %v30 = vlaneseq
  %v31 = vand.u32 %v30, 127
  %vm32 = vcmp.eq.s32.totalorder %v31, 17
  %33 = vset.pattern.permute.xlu0 0
  %34 = vperm.xlu0 %33, %v29
  %v35 = vpop.permute.xlu0 %34
  %vm36 = vcmp.eq.s32.totalorder %v31, %v35
  %vm37 = vmor %vm32, %vm36
  %38 = vset.pattern.permute.xlu0 1
  %39 = vperm.xlu0 %38, %v29
  %v40 = vpop.permute.xlu0 %39
  %vm41 = vcmp.eq.s32.totalorder %v31, %v40
  %vm42 = vmor %vm37, %vm41
  %v43 = vsel %vm42, 1, 0
  %v44 = vcvt.s32.f32 %v43
  %v45 = vld [vmem:[%s2] sm:$0xff]
  %v46 = vld [vmem:[%s2 + $0x8] sm:$0xff]
  %v47 = vld [vmem:[%s2 + $0x10] sm:$0xff]
  %v48 = vld [vmem:[%s2 + $0x18] sm:$0xff]
  %v49 = vld [vmem:[%s1] sm:$0xff]
  %v50 = vld [vmem:[%s3] sm:$0xf]
  %vm51 = vcmask 31744
  %v53 = vsel %vm51, %v49, 0
  %vm55 = vcmask 1043456
  %v57 = vsel %vm55, %v50, 0
  %59 = vmatprep.subr.mxu0 0.0
  %60 = vmatpush1.msra.mxu0 %v57
  %61 = vmatprep.subr.mxu0 0.0
  %62 = vmatpush1.msra.mxu0 0.0
  %63 = vmatprep.subr.mxu0 0.0
  %64 = vmatpush1.msra.mxu0 0.0
  %65 = vmatprep.subr.mxu0 0.0
  %66 = vmatpush1.msra.mxu0 0.0
  %67 = vmatprep.subr.mxu0 0.0
  %68 = vmatpush1.msra.mxu0 0.0
  %69 = vmatprep.subr.mxu0 0.0
  %70 = vmatpush1.msra.mxu0 0.0
  %71 = vmatprep.subr.mxu0 0.0
  %72 = vmatpush1.msra.mxu0 0.0
  %73 = vmatprep.subr.mxu0 0.0
  %74 = vmatpush1.msra.mxu0 0.0
  %75 = vmatprep.subr.mxu0 0.0
  %76 = vmatpush1.msra.mxu0 0.0
  %77 = vmatprep.subr.mxu0 0.0
  %78 = vmatpush1.msra.mxu0 0.0
  %79 = vmatprep.subr.mxu0 0.0
  %80 = vmatpush1.msra.mxu0 0.0
  %81 = vmatprep.subr.mxu0 0.0
  %82 = vmatpush1.msra.mxu0 0.0
  %83 = vmatprep.subr.mxu0 0.0
  %84 = vmatpush1.msra.mxu0 0.0
  %85 = vmatprep.subr.mxu0 0.0
  %86 = vmatpush1.msra.mxu0 0.0
  %87 = vmatprep.subr.mxu0 0.0
  %88 = vmatpush1.msra.mxu0 0.0
  %89 = vmatprep.subr.mxu0 0.0
  %90 = vmatpush1.msra.mxu0 0.0
  %91 = vmatprep.subr.mxu0 0.0
  %92 = vmatpush1.msra.mxu0 0.0
  %93 = vmatprep.subr.mxu0 0.0
  %94 = vmatpush1.msra.mxu0 0.0
  %95 = vmatprep.subr.mxu0 0.0
  %96 = vmatpush1.msra.mxu0 0.0
  %97 = vmatprep.subr.mxu0 0.0
  %98 = vmatpush1.msra.mxu0 0.0
  %99 = vmatprep.subr.mxu0 0.0
  %100 = vmatpush1.msra.mxu0 0.0
  %101 = vmatprep.subr.mxu0 0.0
  %102 = vmatpush1.msra.mxu0 0.0
  %103 = vmatprep.subr.mxu0 0.0
  %104 = vmatpush1.msra.mxu0 0.0
  %105 = vmatprep.subr.mxu0 0.0
  %106 = vmatpush1.msra.mxu0 0.0
  %107 = vmatprep.subr.mxu0 0.0
  %108 = vmatpush1.msra.mxu0 0.0
  %109 = vmatprep.subr.mxu0 0.0
  %110 = vmatpush1.msra.mxu0 0.0
  %111 = vmatprep.subr.mxu0 0.0
  %112 = vmatpush1.msra.mxu0 0.0
  %113 = vmatprep.subr.mxu0 0.0
  %114 = vmatpush1.msra.mxu0 0.0
  %115 = vmatprep.subr.mxu0 0.0
  %116 = vmatpush1.msra.mxu0 0.0
  %117 = vmatprep.subr.mxu0 0.0
  %118 = vmatpush1.msra.mxu0 0.0
  %119 = vmatprep.subr.mxu0 0.0
  %120 = vmatpush1.msra.mxu0 0.0
  %121 = vmatprep.subr.mxu0 0.0
  %122 = vmatpush1.msra.mxu0 0.0
  %123 = vmatprep.mubr.f32.mxu0 0.0
  %124 = vmatmul.mubr.f32.gmra.mrb[0].mxu0 %v53
  %v125 = vpop.f32.mrb[0].mxu0
  %v126 = vadd.f32 0.0, %v125
  %v127 = vpop.f32.mrb[0].mxu0
  %128 = vdwg.mxu0
  %vm129 = vcmask 261120
  %v131 = vsel %vm129, %v44, 0
  %133 = vmatprep.subr.mxu0 0.0
  %134 = vmatpush1.msra.mxu0 %v45
  %135 = vmatprep.subr.mxu0 0.0
  %136 = vmatpush1.msra.mxu0 %v46
  %137 = vmatprep.subr.mxu0 0.0
  %138 = vmatpush1.msra.mxu0 %v47
  %139 = vmatprep.subr.mxu0 0.0
  %140 = vmatpush1.msra.mxu0 %v48
  %141 = vmatprep.subr.mxu0 0.0
  %142 = vmatpush1.msra.mxu0 0.0
  %143 = vmatprep.subr.mxu0 0.0
  %144 = vmatpush1.msra.mxu0 0.0
  %145 = vmatprep.subr.mxu0 0.0
  %146 = vmatpush1.msra.mxu0 0.0
  %147 = vmatprep.subr.mxu0 0.0
  %148 = vmatpush1.msra.mxu0 0.0
  %149 = vmatprep.subr.mxu0 0.0
  %150 = vmatpush1.msra.mxu0 0.0
  %151 = vmatprep.subr.mxu0 0.0
  %152 = vmatpush1.msra.mxu0 0.0
  %153 = vmatprep.subr.mxu0 0.0
  %154 = vmatpush1.msra.mxu0 0.0
  %155 = vmatprep.subr.mxu0 0.0
  %156 = vmatpush1.msra.mxu0 0.0
  %157 = vmatprep.subr.mxu0 0.0
  %158 = vmatpush1.msra.mxu0 0.0
  %159 = vmatprep.subr.mxu0 0.0
  %160 = vmatpush1.msra.mxu0 0.0
  %161 = vmatprep.subr.mxu0 0.0
  %162 = vmatpush1.msra.mxu0 0.0
  %163 = vmatprep.subr.mxu0 0.0
  %164 = vmatpush1.msra.mxu0 0.0
  %165 = vmatprep.subr.mxu0 0.0
  %166 = vmatpush1.msra.mxu0 0.0
  %167 = vmatprep.subr.mxu0 0.0
  %168 = vmatpush1.msra.mxu0 0.0
  %169 = vmatprep.subr.mxu0 0.0
  %170 = vmatpush1.msra.mxu0 0.0
  %171 = vmatprep.subr.mxu0 0.0
  %172 = vmatpush1.msra.mxu0 0.0
  %173 = vmatprep.subr.mxu0 0.0
  %174 = vmatpush1.msra.mxu0 0.0
  %175 = vmatprep.subr.mxu0 0.0
  %176 = vmatpush1.msra.mxu0 0.0
  %177 = vmatprep.subr.mxu0 0.0
  %178 = vmatpush1.msra.mxu0 0.0
  %179 = vmatprep.subr.mxu0 0.0
  %180 = vmatpush1.msra.mxu0 0.0
  %181 = vmatprep.subr.mxu0 0.0
  %182 = vmatpush1.msra.mxu0 0.0
  %183 = vmatprep.subr.mxu0 0.0
  %184 = vmatpush1.msra.mxu0 0.0
  %185 = vmatprep.subr.mxu0 0.0
  %186 = vmatpush1.msra.mxu0 0.0
  %187 = vmatprep.subr.mxu0 0.0
  %188 = vmatpush1.msra.mxu0 0.0
  %189 = vmatprep.subr.mxu0 0.0
  %190 = vmatpush1.msra.mxu0 0.0
  %191 = vmatprep.subr.mxu0 0.0
  %192 = vmatpush1.msra.mxu0 0.0
  %193 = vmatprep.subr.mxu0 0.0
  %194 = vmatpush1.msra.mxu0 0.0
  %195 = vmatprep.subr.mxu0 0.0
  %196 = vmatpush1.msra.mxu0 0.0
  %197 = vmatprep.mubr.f32.mxu0 0.0
  %198 = vmatmul.mubr.f32.gmra.mrb[0].mxu0 %v131
  %v199 = vpop.f32.mrb[0].mxu0
  %v200 = vadd.f32 %v126, %v199
  %v201 = vpop.f32.mrb[0].mxu0
  %202 = vdwg.mxu0
  %v203 = vmax.f32 %v200, 0.0
  %v204 = vld [vmem:[%s4] sm:$0xff]
  %v205 = vld [vmem:[%s4 + $0x8] sm:$0xff]
  %v206 = vld [vmem:[%s4 + $0x10] sm:$0xff]
  %v207 = vld [vmem:[%s4 + $0x18] sm:$0xff]
  %v208 = vld [vmem:[%s4 + $0x20] sm:$0xff]
  %v209 = vld [vmem:[%s4 + $0x28] sm:$0xff]
  %v210 = vld [vmem:[%s4 + $0x30] sm:$0xff]
  %v211 = vld [vmem:[%s4 + $0x38] sm:$0xff]
  %v212 = vld [vmem:[%s4 + $0x40] sm:$0xff]
  %v213 = vld [vmem:[%s4 + $0x48] sm:$0xff]
  %v214 = vld [vmem:[%s4 + $0x50] sm:$0xff]
  %v215 = vld [vmem:[%s4 + $0x58] sm:$0xff]
  %v216 = vld [vmem:[%s4 + $0x60] sm:$0xff]
  %v217 = vld [vmem:[%s4 + $0x68] sm:$0xff]
  %v218 = vld [vmem:[%s4 + $0x70] sm:$0xff]
  %v219 = vld [vmem:[%s4 + $0x78] sm:$0xff]
  %v220 = vld [vmem:[%s5] sm:$0x1]
  %v222 = vlaneseq
  %v223 = vshrl.u32 %v222, 7
  %v224 = vsub.s32 0, %v223
  %v225 = vrot.slane %v220, %v224
  %227 = vmatprep.subr.mxu0 0.0
  %228 = vmatpush1.msra.mxu0 %v204
  %229 = vmatprep.subr.mxu0 0.0
  %230 = vmatpush1.msra.mxu0 %v205
  %231 = vmatprep.subr.mxu0 0.0
  %232 = vmatpush1.msra.mxu0 %v206
  %233 = vmatprep.subr.mxu0 0.0
  %234 = vmatpush1.msra.mxu0 %v207
  %235 = vmatprep.subr.mxu0 0.0
  %236 = vmatpush1.msra.mxu0 %v208
  %237 = vmatprep.subr.mxu0 0.0
  %238 = vmatpush1.msra.mxu0 %v209
  %239 = vmatprep.subr.mxu0 0.0
  %240 = vmatpush1.msra.mxu0 %v210
  %241 = vmatprep.subr.mxu0 0.0
  %242 = vmatpush1.msra.mxu0 %v211
  %243 = vmatprep.subr.mxu0 0.0
  %244 = vmatpush1.msra.mxu0 %v212
  %245 = vmatprep.subr.mxu0 0.0
  %246 = vmatpush1.msra.mxu0 %v213
  %247 = vmatprep.subr.mxu0 0.0
  %248 = vmatpush1.msra.mxu0 %v214
  %249 = vmatprep.subr.mxu0 0.0
  %250 = vmatpush1.msra.mxu0 %v215
  %251 = vmatprep.subr.mxu0 0.0
  %252 = vmatpush1.msra.mxu0 %v216
  %253 = vmatprep.subr.mxu0 0.0
  %254 = vmatpush1.msra.mxu0 %v217
  %255 = vmatprep.subr.mxu0 0.0
  %256 = vmatpush1.msra.mxu0 %v218
  %257 = vmatprep.subr.mxu0 0.0
  %258 = vmatpush1.msra.mxu0 %v219
  %259 = vmatprep.subr.mxu0 0.0
  %260 = vmatpush1.msra.mxu0 0.0
  %261 = vmatprep.subr.mxu0 0.0
  %262 = vmatpush1.msra.mxu0 0.0
  %263 = vmatprep.subr.mxu0 0.0
  %264 = vmatpush1.msra.mxu0 0.0
  %265 = vmatprep.subr.mxu0 0.0
  %266 = vmatpush1.msra.mxu0 0.0
  %267 = vmatprep.subr.mxu0 0.0
  %268 = vmatpush1.msra.mxu0 0.0
  %269 = vmatprep.subr.mxu0 0.0
  %270 = vmatpush1.msra.mxu0 0.0
  %271 = vmatprep.subr.mxu0 0.0
  %272 = vmatpush1.msra.mxu0 0.0
  %273 = vmatprep.subr.mxu0 0.0
  %274 = vmatpush1.msra.mxu0 0.0
  %275 = vmatprep.subr.mxu0 0.0
  %276 = vmatpush1.msra.mxu0 0.0
  %277 = vmatprep.subr.mxu0 0.0
  %278 = vmatpush1.msra.mxu0 0.0
  %279 = vmatprep.subr.mxu0 0.0
  %280 = vmatpush1.msra.mxu0 0.0
  %281 = vmatprep.subr.mxu0 0.0
  %282 = vmatpush1.msra.mxu0 0.0
  %283 = vmatprep.subr.mxu0 0.0
  %284 = vmatpush1.msra.mxu0 0.0
  %285 = vmatprep.subr.mxu0 0.0
  %286 = vmatpush1.msra.mxu0 0.0
  %287 = vmatprep.subr.mxu0 0.0
  %288 = vmatpush1.msra.mxu0 0.0
  %289 = vmatprep.subr.mxu0 0.0
  %290 = vmatpush1.msra.mxu0 0.0
  %291 = vmatprep.mubr.f32.mxu0 0.0
  %292 = vmatmul.mubr.f32.gmra.mrb[0].mxu0 %v203
  %v293 = vpop.f32.mrb[0].mxu0
  %v294 = vadd.f32 %v225, %v293
  %v295 = vpop.f32.mrb[0].mxu0
  %296 = vdwg.mxu0
  %v297 = vmax.f32 %v294, 0.0
  %v298 = vld [vmem:[%s6] sm:$0xff]
  %v299 = vld [vmem:[%s6 + $0x8] sm:$0xff]
  %v300 = vld [vmem:[%s6 + $0x10] sm:$0xff]
  %v301 = vld [vmem:[%s6 + $0x18] sm:$0xff]
  %v302 = vld [vmem:[%s6 + $0x20] sm:$0xff]
  %v303 = vld [vmem:[%s6 + $0x28] sm:$0xff]
  %v304 = vld [vmem:[%s6 + $0x30] sm:$0xff]
  %v305 = vld [vmem:[%s6 + $0x38] sm:$0xff]
  %v306 = vld [vmem:[%s6 + $0x40] sm:$0xff]
  %v307 = vld [vmem:[%s6 + $0x48] sm:$0xff]
  %v308 = vld [vmem:[%s6 + $0x50] sm:$0xff]
  %v309 = vld [vmem:[%s6 + $0x58] sm:$0xff]
  %v310 = vld [vmem:[%s6 + $0x60] sm:$0xff]
  %v311 = vld [vmem:[%s6 + $0x68] sm:$0xff]
  %v312 = vld [vmem:[%s6 + $0x70] sm:$0xff]
  %v313 = vld [vmem:[%s6 + $0x78] sm:$0xff]
  %v314 = vld [vmem:[%s7] sm:$0x1]
  %v316 = vlaneseq
  %v317 = vshrl.u32 %v316, 7
  %v318 = vsub.s32 0, %v317
  %v319 = vrot.slane %v314, %v318
  %321 = vmatprep.subr.mxu0 0.0
  %322 = vmatpush1.msra.mxu0 %v298
  %323 = vmatprep.subr.mxu0 0.0
  %324 = vmatpush1.msra.mxu0 %v299
  %325 = vmatprep.subr.mxu0 0.0
  %326 = vmatpush1.msra.mxu0 %v300
  %327 = vmatprep.subr.mxu0 0.0
  %328 = vmatpush1.msra.mxu0 %v301
  %329 = vmatprep.subr.mxu0 0.0
  %330 = vmatpush1.msra.mxu0 %v302
  %331 = vmatprep.subr.mxu0 0.0
  %332 = vmatpush1.msra.mxu0 %v303
  %333 = vmatprep.subr.mxu0 0.0
  %334 = vmatpush1.msra.mxu0 %v304
  %335 = vmatprep.subr.mxu0 0.0
  %336 = vmatpush1.msra.mxu0 %v305
  %337 = vmatprep.subr.mxu0 0.0
  %338 = vmatpush1.msra.mxu0 %v306
  %339 = vmatprep.subr.mxu0 0.0
  %340 = vmatpush1.msra.mxu0 %v307
  %341 = vmatprep.subr.mxu0 0.0
  %342 = vmatpush1.msra.mxu0 %v308
  %343 = vmatprep.subr.mxu0 0.0
  %344 = vmatpush1.msra.mxu0 %v309
  %345 = vmatprep.subr.mxu0 0.0
  %346 = vmatpush1.msra.mxu0 %v310
  %347 = vmatprep.subr.mxu0 0.0
  %348 = vmatpush1.msra.mxu0 %v311
  %349 = vmatprep.subr.mxu0 0.0
  %350 = vmatpush1.msra.mxu0 %v312
  %351 = vmatprep.subr.mxu0 0.0
  %352 = vmatpush1.msra.mxu0 %v313
  %353 = vmatprep.subr.mxu0 0.0
  %354 = vmatpush1.msra.mxu0 0.0
  %355 = vmatprep.subr.mxu0 0.0
  %356 = vmatpush1.msra.mxu0 0.0
  %357 = vmatprep.subr.mxu0 0.0
  %358 = vmatpush1.msra.mxu0 0.0
  %359 = vmatprep.subr.mxu0 0.0
  %360 = vmatpush1.msra.mxu0 0.0
  %361 = vmatprep.subr.mxu0 0.0
  %362 = vmatpush1.msra.mxu0 0.0
  %363 = vmatprep.subr.mxu0 0.0
  %364 = vmatpush1.msra.mxu0 0.0
  %365 = vmatprep.subr.mxu0 0.0
  %366 = vmatpush1.msra.mxu0 0.0
  %367 = vmatprep.subr.mxu0 0.0
  %368 = vmatpush1.msra.mxu0 0.0
  %369 = vmatprep.subr.mxu0 0.0
  %370 = vmatpush1.msra.mxu0 0.0
  %371 = vmatprep.subr.mxu0 0.0
  %372 = vmatpush1.msra.mxu0 0.0
  %373 = vmatprep.subr.mxu0 0.0
  %374 = vmatpush1.msra.mxu0 0.0
  %375 = vmatprep.subr.mxu0 0.0
  %376 = vmatpush1.msra.mxu0 0.0
  %377 = vmatprep.subr.mxu0 0.0
  %378 = vmatpush1.msra.mxu0 0.0
  %379 = vmatprep.subr.mxu0 0.0
  %380 = vmatpush1.msra.mxu0 0.0
  %381 = vmatprep.subr.mxu0 0.0
  %382 = vmatpush1.msra.mxu0 0.0
  %383 = vmatprep.subr.mxu0 0.0
  %384 = vmatpush1.msra.mxu0 0.0
  %385 = vmatprep.mubr.f32.mxu0 0.0
  %386 = vmatmul.mubr.f32.gmra.mrb[0].mxu0 %v297
  %v387 = vpop.f32.mrb[0].mxu0
  %v388 = vadd.f32 %v319, %v387
  %v389 = vpop.f32.mrb[0].mxu0
  %390 = vdwg.mxu0
  %vm391 = vcmask 15360
  %392 = vst.msk [vmem:[%s8] sm:$0xff] %vm391, %v388
  // Predicated region
  $region34: #{tpu_custom_call.1} parent=0 // pred_check
    _
  $region35: #{tpu_custom_call.1} parent=0 // pred_check_branch
    %394 = sbr.rel (0) target = $region37
  $region36: #{tpu_custom_call.1} parent=0 // pred_region
    _
  $region37: #{tpu_custom_call.1} parent=0 // pred_fallthru
    _
  // Predicated region
  $region38: #{tpu_custom_call.1} parent=0 // pred_check
    _
  $region39: #{tpu_custom_call.1} parent=0 // pred_check_branch
    %396 = sbr.rel (0) target = $region41
  $region40: #{tpu_custom_call.1} parent=0 // pred_region
    _
  $region41: #{tpu_custom_call.1} parent=0 // pred_fallthru
    _

// kernel: tpu_custom_call.1
$region0: #{tpu_custom_call.1}
  #allocation0 [shape = 'u32[]', space=smem, size = 0x4, offset = 0x4, fixed_abs, tag = 'smem constant byte address 0x4 - core index']
  #allocation1 [shape = 'u32[144,128]{1,0:T(1,128)}', space=vmem, size = 0x12000, scoped, tag = 'internal scratch']
  %s0 = inlined_call_operand.vmem [shape: s32[8,2], index: 0, kind: input, shape index: {}]
  %s1 = inlined_call_operand.vmem [shape: f32[8,4], index: 1, kind: input, shape index: {}]
  %s2 = inlined_call_operand.vmem [shape: f32[32,128], index: 2, kind: input, shape index: {}]
  %s3 = inlined_call_operand.vmem [shape: f32[4,128], index: 3, kind: input, shape index: {}]
  %s4 = inlined_call_operand.vmem [shape: f32[128,128], index: 4, kind: input, shape index: {}]
  %s5 = inlined_call_operand.vmem [shape: f32[1,128], index: 5, kind: input, shape index: {}]
  %s6 = inlined_call_operand.vmem [shape: f32[128,2], index: 6, kind: input, shape index: {}]
  %s7 = inlined_call_operand.vmem [shape: f32[1,2], index: 7, kind: input, shape index: {}]
  %s8 = inlined_call_operand.vmem [shape: f32[8,2], index: 8, kind: output, shape index: {}]
  %s9 = sld [smem:[#allocation0]]
  $region42: #{tpu_custom_call.1} parent=0
    _
  %s11 = ssub.s32 1, %s9
  %s12 = scalar_select 0, %s11, %s9
  // Predicated region
  $region2: #{tpu_custom_call.1} parent=0 // pred_check
    _
  $region3: #{tpu_custom_call.1} parent=0 // pred_check_branch
    %14 = sbr.rel (0) target = $region5
  $region4: #{tpu_custom_call.1} parent=0 // pred_region
    _
  $region5: #{tpu_custom_call.1} parent=0 // pred_fallthru
    _
  // Predicated region
  $region6: #{tpu_custom_call.1} parent=0 // pred_check
    _
  $region7: #{tpu_custom_call.1} parent=0 // pred_check_branch
    %16 = sbr.rel (0) target = $region9
  $region8: #{tpu_custom_call.1} parent=0 // pred_region
    _
  $region9: #{tpu_custom_call.1} parent=0 // pred_fallthru
    _
  // Predicated region
  $region10: #{tpu_custom_call.1} parent=0 // pred_check
    _
  $region11: #{tpu_custom_call.1} parent=0 // pred_check_branch
    %18 = sbr.rel (0) target = $region13
  $region12: #{tpu_custom_call.1} parent=0 // pred_region
    _
  $region13: #{tpu_custom_call.1} parent=0 // pred_fallthru
    _
  // Predicated region
  $region14: #{tpu_custom_call.1} parent=0 // pred_check
    _
  $region15: #{tpu_custom_call.1} parent=0 // pred_check_branch
    %20 = sbr.rel (0) target = $region17
  $region16: #{tpu_custom_call.1} parent=0 // pred_region
    _
  $region17: #{tpu_custom_call.1} parent=0 // pred_fallthru
    _
  // Predicated region
  $region18: #{tpu_custom_call.1} parent=0 // pred_check
    _
  $region19: #{tpu_custom_call.1} parent=0 // pred_check_branch
    %22 = sbr.rel (0) target = $region21
  $region20: #{tpu_custom_call.1} parent=0 // pred_region
    _
  $region21: #{tpu_custom_call.1} parent=0 // pred_fallthru
    _
  // Predicated region
  $region22: #{tpu_custom_call.1} parent=0 // pred_check
    _
  $region23: #{tpu_custom_call.1} parent=0 // pred_check_branch
    %24 = sbr.rel (0) target = $region25
  $region24: #{tpu_custom_call.1} parent=0 // pred_region
    _
  $region25: #{tpu_custom_call.1} parent=0 // pred_fallthru
    _
  // Predicated region
  $region26: #{tpu_custom_call.1} parent=0 // pred_check
    _
  $region27: #{tpu_custom_call.1} parent=0 // pred_check_branch
    %26 = sbr.rel (0) target = $region29
  $region28: #{tpu_custom_call.1} parent=0 // pred_region
    _
  $region29: #{tpu_custom_call.1} parent=0 // pred_fallthru
    _
  // Predicated region
  $region30: #{tpu_custom_call.1} parent=0 // pred_check
    _
  $region31: #{tpu_custom_call.1} parent=0 // pred_check_branch
    %28 = sbr.rel (0) target = $region33
  $region32: #{tpu_custom_call.1} parent=0 // pred_region
    _
  $region33: #{tpu_custom_call.1} parent=0 // pred_fallthru
    _
  %v29 = vld [vmem:[%s0] sm:$0xff]
  %v30 = vlaneseq
  %v31 = vand.u32 %v30, 127
  %vm32 = vcmp.eq.s32.totalorder %v31, 17
  %33 = vset.pattern.permute.xlu0 0
  %34 = vperm.xlu0 %33, %v29
  %v35 = vpop.permute.xlu0 %34
  %vm36 = vcmp.eq.s32.totalorder %v31, %v35
  %vm37 = vmor %vm32, %vm36
  %38 = vset.pattern.permute.xlu0 1
  %39 = vperm.xlu0 %38, %v29
  %v40 = vpop.permute.xlu0 %39
  %vm41 = vcmp.eq.s32.totalorder %v31, %v40
  %vm42 = vmor %vm37, %vm41
  %v43 = vsel %vm42, 1, 0
  %v44 = vcvt.s32.f32 %v43
  %v45 = vld [vmem:[%s2] sm:$0xff]
  %v46 = vld [vmem:[%s2 + $0x8] sm:$0xff]
  %v47 = vld [vmem:[%s2 + $0x10] sm:$0xff]
  %v48 = vld [vmem:[%s2 + $0x18] sm:$0xff]
  %v49 = vld [vmem:[%s1] sm:$0xff]
  %v50 = vld [vmem:[%s3] sm:$0xf]
  %vm51 = vcmask 31744
  %v53 = vsel %vm51, %v49, 0
  %vm55 = vcmask 1043456
  %v57 = vsel %vm55, %v50, 0
  %59 = vmatprep.subr.mxu0 0.0
  %60 = vmatpush1.msra.mxu0 %v57
  %61 = vmatprep.subr.mxu0 0.0
  %62 = vmatpush1.msra.mxu0 0.0
  %63 = vmatprep.subr.mxu0 0.0
  %64 = vmatpush1.msra.mxu0 0.0
  %65 = vmatprep.subr.mxu0 0.0
  %66 = vmatpush1.msra.mxu0 0.0
  %67 = vmatprep.subr.mxu0 0.0
  %68 = vmatpush1.msra.mxu0 0.0
  %69 = vmatprep.subr.mxu0 0.0
  %70 = vmatpush1.msra.mxu0 0.0
  %71 = vmatprep.subr.mxu0 0.0
  %72 = vmatpush1.msra.mxu0 0.0
  %73 = vmatprep.subr.mxu0 0.0
  %74 = vmatpush1.msra.mxu0 0.0
  %75 = vmatprep.subr.mxu0 0.0
  %76 = vmatpush1.msra.mxu0 0.0
  %77 = vmatprep.subr.mxu0 0.0
  %78 = vmatpush1.msra.mxu0 0.0
  %79 = vmatprep.subr.mxu0 0.0
  %80 = vmatpush1.msra.mxu0 0.0
  %81 = vmatprep.subr.mxu0 0.0
  %82 = vmatpush1.msra.mxu0 0.0
  %83 = vmatprep.subr.mxu0 0.0
  %84 = vmatpush1.msra.mxu0 0.0
  %85 = vmatprep.subr.mxu0 0.0
  %86 = vmatpush1.msra.mxu0 0.0
  %87 = vmatprep.subr.mxu0 0.0
  %88 = vmatpush1.msra.mxu0 0.0
  %89 = vmatprep.subr.mxu0 0.0
  %90 = vmatpush1.msra.mxu0 0.0
  %91 = vmatprep.subr.mxu0 0.0
  %92 = vmatpush1.msra.mxu0 0.0
  %93 = vmatprep.subr.mxu0 0.0
  %94 = vmatpush1.msra.mxu0 0.0
  %95 = vmatprep.subr.mxu0 0.0
  %96 = vmatpush1.msra.mxu0 0.0
  %97 = vmatprep.subr.mxu0 0.0
  %98 = vmatpush1.msra.mxu0 0.0
  %99 = vmatprep.subr.mxu0 0.0
  %100 = vmatpush1.msra.mxu0 0.0
  %101 = vmatprep.subr.mxu0 0.0
  %102 = vmatpush1.msra.mxu0 0.0
  %103 = vmatprep.subr.mxu0 0.0
  %104 = vmatpush1.msra.mxu0 0.0
  %105 = vmatprep.subr.mxu0 0.0
  %106 = vmatpush1.msra.mxu0 0.0
  %107 = vmatprep.subr.mxu0 0.0
  %108 = vmatpush1.msra.mxu0 0.0
  %109 = vmatprep.subr.mxu0 0.0
  %110 = vmatpush1.msra.mxu0 0.0
  %111 = vmatprep.subr.mxu0 0.0
  %112 = vmatpush1.msra.mxu0 0.0
  %113 = vmatprep.subr.mxu0 0.0
  %114 = vmatpush1.msra.mxu0 0.0
  %115 = vmatprep.subr.mxu0 0.0
  %116 = vmatpush1.msra.mxu0 0.0
  %117 = vmatprep.subr.mxu0 0.0
  %118 = vmatpush1.msra.mxu0 0.0
  %119 = vmatprep.subr.mxu0 0.0
  %120 = vmatpush1.msra.mxu0 0.0
  %121 = vmatprep.subr.mxu0 0.0
  %122 = vmatpush1.msra.mxu0 0.0
  %123 = vmatprep.mubr.f32.mxu0 0.0
  %124 = vmatmul.mubr.f32.gmra.mrb[0].mxu0 %v53
  %v125 = vpop.f32.mrb[0].mxu0
  %v126 = vadd.f32 0.0, %v125
  %v127 = vpop.f32.mrb[0].mxu0
  %128 = vdwg.mxu0
  %vm129 = vcmask 261120
  %v131 = vsel %vm129, %v44, 0
  %133 = vmatprep.subr.mxu0 0.0
  %134 = vmatpush1.msra.mxu0 %v45
  %135 = vmatprep.subr.mxu0 0.0
  %136 = vmatpush1.msra.mxu0 %v46
  %137 = vmatprep.subr.mxu0 0.0
  %138 = vmatpush1.msra.mxu0 %v47
  %139 = vmatprep.subr.mxu0 0.0
  %140 = vmatpush1.msra.mxu0 %v48
  %141 = vmatprep.subr.mxu0 0.0
  %142 = vmatpush1.msra.mxu0 0.0
  %143 = vmatprep.subr.mxu0 0.0
  %144 = vmatpush1.msra.mxu0 0.0
  %145 = vmatprep.subr.mxu0 0.0
  %146 = vmatpush1.msra.mxu0 0.0
  %147 = vmatprep.subr.mxu0 0.0
  %148 = vmatpush1.msra.mxu0 0.0
  %149 = vmatprep.subr.mxu0 0.0
  %150 = vmatpush1.msra.mxu0 0.0
  %151 = vmatprep.subr.mxu0 0.0
  %152 = vmatpush1.msra.mxu0 0.0
  %153 = vmatprep.subr.mxu0 0.0
  %154 = vmatpush1.msra.mxu0 0.0
  %155 = vmatprep.subr.mxu0 0.0
  %156 = vmatpush1.msra.mxu0 0.0
  %157 = vmatprep.subr.mxu0 0.0
  %158 = vmatpush1.msra.mxu0 0.0
  %159 = vmatprep.subr.mxu0 0.0
  %160 = vmatpush1.msra.mxu0 0.0
  %161 = vmatprep.subr.mxu0 0.0
  %162 = vmatpush1.msra.mxu0 0.0
  %163 = vmatprep.subr.mxu0 0.0
  %164 = vmatpush1.msra.mxu0 0.0
  %165 = vmatprep.subr.mxu0 0.0
  %166 = vmatpush1.msra.mxu0 0.0
  %167 = vmatprep.subr.mxu0 0.0
  %168 = vmatpush1.msra.mxu0 0.0
  %169 = vmatprep.subr.mxu0 0.0
  %170 = vmatpush1.msra.mxu0 0.0
  %171 = vmatprep.subr.mxu0 0.0
  %172 = vmatpush1.msra.mxu0 0.0
  %173 = vmatprep.subr.mxu0 0.0
  %174 = vmatpush1.msra.mxu0 0.0
  %175 = vmatprep.subr.mxu0 0.0
  %176 = vmatpush1.msra.mxu0 0.0
  %177 = vmatprep.subr.mxu0 0.0
  %178 = vmatpush1.msra.mxu0 0.0
  %179 = vmatprep.subr.mxu0 0.0
  %180 = vmatpush1.msra.mxu0 0.0
  %181 = vmatprep.subr.mxu0 0.0
  %182 = vmatpush1.msra.mxu0 0.0
  %183 = vmatprep.subr.mxu0 0.0
  %184 = vmatpush1.msra.mxu0 0.0
  %185 = vmatprep.subr.mxu0 0.0
  %186 = vmatpush1.msra.mxu0 0.0
  %187 = vmatprep.subr.mxu0 0.0
  %188 = vmatpush1.msra.mxu0 0.0
  %189 = vmatprep.subr.mxu0 0.0
  %190 = vmatpush1.msra.mxu0 0.0
  %191 = vmatprep.subr.mxu0 0.0
  %192 = vmatpush1.msra.mxu0 0.0
  %193 = vmatprep.subr.mxu0 0.0
  %194 = vmatpush1.msra.mxu0 0.0
  %195 = vmatprep.subr.mxu0 0.0
  %196 = vmatpush1.msra.mxu0 0.0
  %197 = vmatprep.mubr.f32.mxu0 0.0
  %198 = vmatmul.mubr.f32.gmra.mrb[0].mxu0 %v131
  %v199 = vpop.f32.mrb[0].mxu0
  %v200 = vadd.f32 %v126, %v199
  %v201 = vpop.f32.mrb[0].mxu0
  %202 = vdwg.mxu0
  %v203 = vmax.f32 %v200, 0.0
  %v204 = vld [vmem:[%s4] sm:$0xff]
  %v205 = vld [vmem:[%s4 + $0x8] sm:$0xff]
  %v206 = vld [vmem:[%s4 + $0x10] sm:$0xff]
  %v207 = vld [vmem:[%s4 + $0x18] sm:$0xff]
  %v208 = vld [vmem:[%s4 + $0x20] sm:$0xff]
  %v209 = vld [vmem:[%s4 + $0x28] sm:$0xff]
  %v210 = vld [vmem:[%s4 + $0x30] sm:$0xff]
  %v211 = vld [vmem:[%s4 + $0x38] sm:$0xff]
  %v212 = vld [vmem:[%s4 + $0x40] sm:$0xff]
  %v213 = vld [vmem:[%s4 + $0x48] sm:$0xff]
  %v214 = vld [vmem:[%s4 + $0x50] sm:$0xff]
  %v215 = vld [vmem:[%s4 + $0x58] sm:$0xff]
  %v216 = vld [vmem:[%s4 + $0x60] sm:$0xff]
  %v217 = vld [vmem:[%s4 + $0x68] sm:$0xff]
  %v218 = vld [vmem:[%s4 + $0x70] sm:$0xff]
  %v219 = vld [vmem:[%s4 + $0x78] sm:$0xff]
  %v220 = vld [vmem:[%s5] sm:$0x1]
  %v222 = vlaneseq
  %v223 = vshrl.u32 %v222, 7
  %v224 = vsub.s32 0, %v223
  %v225 = vrot.slane %v220, %v224
  %227 = vmatprep.subr.mxu0 0.0
  %228 = vmatpush1.msra.mxu0 %v204
  %229 = vmatprep.subr.mxu0 0.0
  %230 = vmatpush1.msra.mxu0 %v205
  %231 = vmatprep.subr.mxu0 0.0
  %232 = vmatpush1.msra.mxu0 %v206
  %233 = vmatprep.subr.mxu0 0.0
  %234 = vmatpush1.msra.mxu0 %v207
  %235 = vmatprep.subr.mxu0 0.0
  %236 = vmatpush1.msra.mxu0 %v208
  %237 = vmatprep.subr.mxu0 0.0
  %238 = vmatpush1.msra.mxu0 %v209
  %239 = vmatprep.subr.mxu0 0.0
  %240 = vmatpush1.msra.mxu0 %v210
  %241 = vmatprep.subr.mxu0 0.0
  %242 = vmatpush1.msra.mxu0 %v211
  %243 = vmatprep.subr.mxu0 0.0
  %244 = vmatpush1.msra.mxu0 %v212
  %245 = vmatprep.subr.mxu0 0.0
  %246 = vmatpush1.msra.mxu0 %v213
  %247 = vmatprep.subr.mxu0 0.0
  %248 = vmatpush1.msra.mxu0 %v214
  %249 = vmatprep.subr.mxu0 0.0
  %250 = vmatpush1.msra.mxu0 %v215
  %251 = vmatprep.subr.mxu0 0.0
  %252 = vmatpush1.msra.mxu0 %v216
  %253 = vmatprep.subr.mxu0 0.0
  %254 = vmatpush1.msra.mxu0 %v217
  %255 = vmatprep.subr.mxu0 0.0
  %256 = vmatpush1.msra.mxu0 %v218
  %257 = vmatprep.subr.mxu0 0.0
  %258 = vmatpush1.msra.mxu0 %v219
  %259 = vmatprep.subr.mxu0 0.0
  %260 = vmatpush1.msra.mxu0 0.0
  %261 = vmatprep.subr.mxu0 0.0
  %262 = vmatpush1.msra.mxu0 0.0
  %263 = vmatprep.subr.mxu0 0.0
  %264 = vmatpush1.msra.mxu0 0.0
  %265 = vmatprep.subr.mxu0 0.0
  %266 = vmatpush1.msra.mxu0 0.0
  %267 = vmatprep.subr.mxu0 0.0
  %268 = vmatpush1.msra.mxu0 0.0
  %269 = vmatprep.subr.mxu0 0.0
  %270 = vmatpush1.msra.mxu0 0.0
  %271 = vmatprep.subr.mxu0 0.0
  %272 = vmatpush1.msra.mxu0 0.0
  %273 = vmatprep.subr.mxu0 0.0
  %274 = vmatpush1.msra.mxu0 0.0
  %275 = vmatprep.subr.mxu0 0.0
  %276 = vmatpush1.msra.mxu0 0.0
  %277 = vmatprep.subr.mxu0 0.0
  %278 = vmatpush1.msra.mxu0 0.0
  %279 = vmatprep.subr.mxu0 0.0
  %280 = vmatpush1.msra.mxu0 0.0
  %281 = vmatprep.subr.mxu0 0.0
  %282 = vmatpush1.msra.mxu0 0.0
  %283 = vmatprep.subr.mxu0 0.0
  %284 = vmatpush1.msra.mxu0 0.0
  %285 = vmatprep.subr.mxu0 0.0
  %286 = vmatpush1.msra.mxu0 0.0
  %287 = vmatprep.subr.mxu0 0.0
  %288 = vmatpush1.msra.mxu0 0.0
  %289 = vmatprep.subr.mxu0 0.0
  %290 = vmatpush1.msra.mxu0 0.0
  %291 = vmatprep.mubr.f32.mxu0 0.0
  %292 = vmatmul.mubr.f32.gmra.mrb[0].mxu0 %v203
  %v293 = vpop.f32.mrb[0].mxu0
  %v294 = vadd.f32 %v225, %v293
  %v295 = vpop.f32.mrb[0].mxu0
  %296 = vdwg.mxu0
  %v297 = vmax.f32 %v294, 0.0
  %v298 = vld [vmem:[%s6] sm:$0xff]
  %v299 = vld [vmem:[%s6 + $0x8] sm:$0xff]
  %v300 = vld [vmem:[%s6 + $0x10] sm:$0xff]
  %v301 = vld [vmem:[%s6 + $0x18] sm:$0xff]
  %v302 = vld [vmem:[%s6 + $0x20] sm:$0xff]
  %v303 = vld [vmem:[%s6 + $0x28] sm:$0xff]
  %v304 = vld [vmem:[%s6 + $0x30] sm:$0xff]
  %v305 = vld [vmem:[%s6 + $0x38] sm:$0xff]
  %v306 = vld [vmem:[%s6 + $0x40] sm:$0xff]
  %v307 = vld [vmem:[%s6 + $0x48] sm:$0xff]
  %v308 = vld [vmem:[%s6 + $0x50] sm:$0xff]
  %v309 = vld [vmem:[%s6 + $0x58] sm:$0xff]
  %v310 = vld [vmem:[%s6 + $0x60] sm:$0xff]
  %v311 = vld [vmem:[%s6 + $0x68] sm:$0xff]
  %v312 = vld [vmem:[%s6 + $0x70] sm:$0xff]
  %v313 = vld [vmem:[%s6 + $0x78] sm:$0xff]
  %v314 = vld [vmem:[%s7] sm:$0x1]
  %v316 = vlaneseq
  %v317 = vshrl.u32 %v316, 7
  %v318 = vsub.s32 0, %v317
  %v319 = vrot.slane %v314, %v318
  %321 = vmatprep.subr.mxu0 0.0
  %322 = vmatpush1.msra.mxu0 %v298
  %323 = vmatprep.subr.mxu0 0.0
  %324 = vmatpush1.msra.mxu0 %v299
  %325 = vmatprep.subr.mxu0 0.0
  %326 = vmatpush1.msra.mxu0 %v300
  %327 = vmatprep.subr.mxu0 0.0
  %328 = vmatpush1.msra.mxu0 %v301
  %329 = vmatprep.subr.mxu0 0.0
  %330 = vmatpush1.msra.mxu0 %v302
  %331 = vmatprep.subr.mxu0 0.0
  %332 = vmatpush1.msra.mxu0 %v303
  %333 = vmatprep.subr.mxu0 0.0
  %334 = vmatpush1.msra.mxu0 %v304
  %335 = vmatprep.subr.mxu0 0.0
  %336 = vmatpush1.msra.mxu0 %v305
  %337 = vmatprep.subr.mxu0 0.0
  %338 = vmatpush1.msra.mxu0 %v306
  %339 = vmatprep.subr.mxu0 0.0
  %340 = vmatpush1.msra.mxu0 %v307
  %341 = vmatprep.subr.mxu0 0.0
  %342 = vmatpush1.msra.mxu0 %v308
  %343 = vmatprep.subr.mxu0 0.0
  %344 = vmatpush1.msra.mxu0 %v309
  %345 = vmatprep.subr.mxu0 0.0
  %346 = vmatpush1.msra.mxu0 %v310
  %347 = vmatprep.subr.mxu0 0.0
  %348 = vmatpush1.msra.mxu0 %v311
  %349 = vmatprep.subr.mxu0 0.0
  %350 = vmatpush1.msra.mxu0 %v312
  %351 = vmatprep.subr.mxu0 0.0
  %352 = vmatpush1.msra.mxu0 %v313
  %353 = vmatprep.subr.mxu0 0.0
  %354 = vmatpush1.msra.mxu0 0.0
  %355 = vmatprep.subr.mxu0 0.0
  %356 = vmatpush1.msra.mxu0 0.0
  %357 = vmatprep.subr.mxu0 0.0
  %358 = vmatpush1.msra.mxu0 0.0
  %359 = vmatprep.subr.mxu0 0.0
  %360 = vmatpush1.msra.mxu0 0.0
  %361 = vmatprep.subr.mxu0 0.0
  %362 = vmatpush1.msra.mxu0 0.0
  %363 = vmatprep.subr.mxu0 0.0
  %364 = vmatpush1.msra.mxu0 0.0
  %365 = vmatprep.subr.mxu0 0.0
  %366 = vmatpush1.msra.mxu0 0.0
  %367 = vmatprep.subr.mxu0 0.0
  %368 = vmatpush1.msra.mxu0 0.0
  %369 = vmatprep.subr.mxu0 0.0
  %370 = vmatpush1.msra.mxu0 0.0
  %371 = vmatprep.subr.mxu0 0.0
  %372 = vmatpush1.msra.mxu0 0.0
  %373 = vmatprep.subr.mxu0 0.0
  %374 = vmatpush1.msra.mxu0 0.0
  %375 = vmatprep.subr.mxu0 0.0
  %376 = vmatpush1.msra.mxu0 0.0
  %377 = vmatprep.subr.mxu0 0.0
  %378 = vmatpush1.msra.mxu0 0.0
  %379 = vmatprep.subr.mxu0 0.0
  %380 = vmatpush1.msra.mxu0 0.0
  %381 = vmatprep.subr.mxu0 0.0
  %382 = vmatpush1.msra.mxu0 0.0
  %383 = vmatprep.subr.mxu0 0.0
  %384 = vmatpush1.msra.mxu0 0.0
  %385 = vmatprep.mubr.f32.mxu0 0.0
  %386 = vmatmul.mubr.f32.gmra.mrb[0].mxu0 %v297
  %v387 = vpop.f32.mrb[0].mxu0
  %v388 = vadd.f32 %v319, %v387
  %v389 = vpop.f32.mrb[0].mxu0
  %390 = vdwg.mxu0
  %vm391 = vcmask 15360
  %392 = vst.msk [vmem:[%s8] sm:$0xff] %vm391, %v388
  // Predicated region
  $region34: #{tpu_custom_call.1} parent=0 // pred_check
    _
  $region35: #{tpu_custom_call.1} parent=0 // pred_check_branch
    %394 = sbr.rel (0) target = $region37
  $region36: #{tpu_custom_call.1} parent=0 // pred_region
    _
  $region37: #{tpu_custom_call.1} parent=0 // pred_fallthru
    _
  // Predicated region
  $region38: #{tpu_custom_call.1} parent=0 // pred_check
    _
  $region39: #{tpu_custom_call.1} parent=0 // pred_check_branch
    %396 = sbr.rel (0) target = $region41
  $region40: #{tpu_custom_call.1} parent=0 // pred_region
    _
  $region41: #{tpu_custom_call.1} parent=0 // pred_fallthru
    _

</llo_original>
